<compile_context>
chip_gen: v5e
topology: v5e:2x2
jax: 0.10.0
libtpu: 0.0.40
codegen_flags: <defaults>
</compile_context>

<pallas_src>
import math

import jax
import jax.numpy as jnp
from jax import lax
from jax.experimental import pallas as pl
from jax.experimental.pallas import tpu as pltpu

D_IN = 773
H1 = 256
H2 = 64
H2_PAD = 128     # pad fc2 output to a full 128-lane tile (zero cols, exact)


def _round_up(n, m):
    return ((n + m - 1) // m) * m


def _mlp_kernel(x_ref, w1_ref, b1_ref, w2_ref, b2_ref, w3_ref, b3_ref, o_ref):
    x = x_ref[...]                                        # (TB, 773) bf16
    # fc1 + ReLU  (bf16 MXU path, f32 accumulate; K=773 masked internally)
    h1 = jnp.dot(x, w1_ref[...], preferred_element_type=jnp.float32)
    h1 = jnp.maximum(h1 + b1_ref[...], 0.0)               # (TB, 256) f32
    # fc2 + ReLU  (output padded to 128 lanes; padded cols are exactly 0)
    h2 = jnp.dot(h1.astype(jnp.bfloat16), w2_ref[...],
                 preferred_element_type=jnp.float32)
    h2 = jnp.maximum(h2 + b2_ref[...], 0.0)               # (TB, 128) f32
    # out + sigmoid: (1,128) . (TB,128)^T -> (1,TB) so the store is lane-dense
    logits = lax.dot_general(
        w3_ref[...], h2,
        dimension_numbers=(((1,), (1,)), ((), ())),
        preferred_element_type=jnp.float32)                # (1, TB)
    o_ref[...] = jax.nn.sigmoid(logits + b3_ref[0, 0])


def chess_value_net(x, kparams, *, tb=2048):
    """x: [B, 773] float32 -> [B, 1] float32. kparams from prepare_kernel_params."""
    w1, b1, w2, b2, w3, b3 = kparams
    B, d = x.shape
    assert d == D_IN

    # Stream activations as bf16 (halves the dominant HBM stream).
    x = x.astype(jnp.bfloat16)

    # Batch tile: multiple of 16 (bf16 sublane packing), capped by tb, and
    # sized so the grid has >=2 steps when possible (v7x megacore sharding).
    TB = max(16, min(tb, _round_up(pl.cdiv(B, 2), 16)))
    nb = int(pl.cdiv(B, TB))
    Bp = nb * TB
    if Bp != B:
        # Pad only the batch dim (cheap); padded rows are sliced off below.
        x = jnp.pad(x, ((0, Bp - B), (0, 0)))

    flops = 2 * Bp * (D_IN * H1 + H1 * H2_PAD + H2_PAD)
    bytes_accessed = int(
        x.size * x.dtype.itemsize
        + sum(int(p.size) * p.dtype.itemsize for p in kparams)
        + Bp * 4
    )
    cost = pl.CostEstimate(flops=flops, transcendentals=Bp,
                           bytes_accessed=bytes_accessed)

    def resident(arr):
        # Full-array block, constant index_map -> stays VMEM-resident.
        return pl.BlockSpec(arr.shape, lambda i: (0, 0))

    out = pl.pallas_call(
        _mlp_kernel,
        out_shape=jax.ShapeDtypeStruct((nb, TB), jnp.float32),
        grid=(nb,),
        in_specs=[
            pl.BlockSpec((TB, D_IN), lambda i: (i, 0)),     # x (minor = full 773)
            resident(w1),                                   # (773, 256) bf16
            resident(b1),                                   # (1, 256)   f32
            resident(w2),                                   # (256, 128) bf16
            resident(b2),                                   # (1, 128)   f32
            resident(w3),                                   # (1, 128)   f32
            pl.BlockSpec(memory_space=pltpu.MemorySpace.SMEM),  # b3 (1,1) scalar
        ],
        out_specs=pl.BlockSpec((1, TB), lambda i: (i, 0)),
        compiler_params=pltpu.CompilerParams(
            dimension_semantics=("parallel",),
            vmem_limit_bytes=32 * 1024 * 1024,
        ),
        cost_estimate=cost,
    )(x, w1, b1, w2, b2, w3, b3)

    # (nb, TB) rows are contiguous batch chunks -> flatten and strip padding.
    return out.reshape(Bp, 1)[:B]


def init_params(key):
    """nn.Linear-style init (uniform +/-1/sqrt(fan_in)), f32, layout [in, out]."""
    dims = [(D_IN, H1), (H1, H2), (H2, 1)]
    params = []
    for fan_in, fan_out in dims:
        key, kw, kb = jax.random.split(key, 3)
        bound = 1.0 / math.sqrt(fan_in)
        w = jax.random.uniform(kw, (fan_in, fan_out), jnp.float32, -bound, bound)
        b = jax.random.uniform(kb, (1, fan_out), jnp.float32, -bound, bound)
        params.extend([w, b])
    return tuple(params)


def prepare_kernel_params(params):
    """Cast/pad f32 [in,out] params into the kernel's layout."""
    w1, b1, w2, b2, w3, b3 = params
    # fc1: keep K=773 unpadded; bf16 for HBM/MXU.
    w1p = w1.astype(jnp.bfloat16)                                   # (773, 256)
    # fc2: pad output dim 64 -> 128 with zero cols / zero bias (lane-dense).
    w2p = jnp.pad(w2, ((0, 0), (0, H2_PAD - H2))).astype(jnp.bfloat16)  # (256,128)
    b2p = jnp.pad(b2, ((0, 0), (0, H2_PAD - H2)))                    # (1, 128)
    # out layer as a [1, 128] f32 row (zero-padded) for the final dot_general.
    w3p = jnp.pad(w3.reshape(1, H2), ((0, 0), (0, H2_PAD - H2)))     # (1, 128)
    return (w1p, b1, w2p, b2p, w3p, b3)                              # b3: (1,1) f32


def reference_forward(x, params):
    w1, b1, w2, b2, w3, b3 = params
    h1 = jnp.maximum(x @ w1 + b1, 0.0)
    h2 = jnp.maximum(h1 @ w2 + b2, 0.0)
    return jax.nn.sigmoid(h2 @ w3 + b3)


if __name__ == "__main__":
    key = jax.random.PRNGKey(0)
    key, kx = jax.random.split(key)

    params_f32 = init_params(key)
    kparams = prepare_kernel_params(params_f32)

    # Small batch: single grid step (TB clamped to 16, batch padded 8 -> 16).
    B = 8
    x = jax.random.normal(kx, (B, D_IN), jnp.float32)
    out = jax.block_until_ready(chess_value_net(x, kparams))
    ref = reference_forward(x, params_f32)
    assert out.shape == (B, 1)
    assert jnp.allclose(out, ref, atol=1e-2, rtol=1e-2), float(
        jnp.max(jnp.abs(out - ref)))

    # Ragged batch, default tiling: >=2 grid steps (v7x dual-TC path).
    key, kx2 = jax.random.split(key)
    B2 = 200
    x2 = jax.random.normal(kx2, (B2, D_IN), jnp.float32)
    out2 = jax.block_until_ready(chess_value_net(x2, kparams))
    ref2 = reference_forward(x2, params_f32)
    assert out2.shape == (B2, 1)
    assert jnp.allclose(out2, ref2, atol=1e-2, rtol=1e-2), float(
        jnp.max(jnp.abs(out2 - ref2)))

    # Small explicit tile: exercises 4 grid steps + batch padding.
    out3 = jax.block_until_ready(chess_value_net(x2, kparams, tb=64))
    assert out3.shape == (B2, 1)
    assert jnp.allclose(out3, ref2, atol=1e-2, rtol=1e-2), float(
        jnp.max(jnp.abs(out3 - ref2)))

    print("KERNEL_OK")
</pallas_src>

<mosaic_0001>
module attributes {stable_mosaic.version = 11 : i64} {
  func.func @_mlp_kernel(%arg0: i32, %arg1: memref<16x773xbf16, #tpu.memory_space<vmem>>, %arg2: memref<773x256xbf16, #tpu.memory_space<vmem>>, %arg3: memref<1x256xf32, #tpu.memory_space<vmem>>, %arg4: memref<256x128xbf16, #tpu.memory_space<vmem>>, %arg5: memref<1x128xf32, #tpu.memory_space<vmem>>, %arg6: memref<1x128xf32, #tpu.memory_space<vmem>>, %arg7: memref<1x1xf32, #tpu.memory_space<smem>>, %arg8: memref<1x16xf32, #tpu.memory_space<vmem>>) attributes {dimension_semantics = [#tpu.dimension_semantics<parallel>], iteration_bounds = array<i64: 1>, scalar_prefetch = 0 : i64, scratch_operands = 0 : i64, tpu.core_type = #tpu.core_type<tc>, window_params = [{transform_indices = @transform_0, window_bounds = array<i64: 16, 773>}, {pipeline_mode = #tpu.pipeline_mode<synchronous>, transform_indices = @transform_1, window_bounds = array<i64: 773, 256>}, {pipeline_mode = #tpu.pipeline_mode<synchronous>, transform_indices = @transform_2, window_bounds = array<i64: 1, 256>}, {pipeline_mode = #tpu.pipeline_mode<synchronous>, transform_indices = @transform_3, window_bounds = array<i64: 256, 128>}, {pipeline_mode = #tpu.pipeline_mode<synchronous>, transform_indices = @transform_4, window_bounds = array<i64: 1, 128>}, {pipeline_mode = #tpu.pipeline_mode<synchronous>, transform_indices = @transform_5, window_bounds = array<i64: 1, 128>}, {transform_indices = @transform_6, window_bounds = array<i64: 1, 1>}, {transform_indices = @transform_7, window_bounds = array<i64: 1, 16>}]} {
    %c0 = arith.constant 0 : index
    %c0_0 = arith.constant 0 : index
    %0 = vector.load %arg1[%c0, %c0_0] : memref<16x773xbf16, #tpu.memory_space<vmem>>, vector<16x773xbf16>
    %c0_1 = arith.constant 0 : index
    %c0_2 = arith.constant 0 : index
    %1 = vector.load %arg2[%c0_1, %c0_2] : memref<773x256xbf16, #tpu.memory_space<vmem>>, vector<773x256xbf16>
    %cst = arith.constant dense<0.000000e+00> : vector<16x256xf32>
    %2 = tpu.matmul %0, %1, %cst {dimension_numbers = #tpu.dot_dimension_numbers<[1], [0], [0], [1], [0, 0, 1, 1], [], []>} : vector<16x773xbf16>, vector<773x256xbf16>, vector<16x256xf32> -> vector<16x256xf32>
    %c0_3 = arith.constant 0 : index
    %c0_4 = arith.constant 0 : index
    %3 = vector.load %arg3[%c0_3, %c0_4] : memref<1x256xf32, #tpu.memory_space<vmem>>, vector<1x256xf32>
    %4 = vector.broadcast %3 : vector<1x256xf32> to vector<16x256xf32>
    %5 = arith.addf %2, %4 : vector<16x256xf32>
    %cst_5 = arith.constant 0.000000e+00 : f32
    %6 = vector.broadcast %cst_5 : f32 to vector<16x256xf32>
    %7 = arith.maximumf %5, %6 : vector<16x256xf32>
    %8 = arith.truncf %7 : vector<16x256xf32> to vector<16x256xbf16>
    %c0_6 = arith.constant 0 : index
    %c0_7 = arith.constant 0 : index
    %9 = vector.load %arg4[%c0_6, %c0_7] : memref<256x128xbf16, #tpu.memory_space<vmem>>, vector<256x128xbf16>
    %cst_8 = arith.constant dense<0.000000e+00> : vector<16x128xf32>
    %10 = tpu.matmul %8, %9, %cst_8 {dimension_numbers = #tpu.dot_dimension_numbers<[1], [0], [0], [1], [0, 0, 1, 1], [], []>} : vector<16x256xbf16>, vector<256x128xbf16>, vector<16x128xf32> -> vector<16x128xf32>
    %c0_9 = arith.constant 0 : index
    %c0_10 = arith.constant 0 : index
    %11 = vector.load %arg5[%c0_9, %c0_10] : memref<1x128xf32, #tpu.memory_space<vmem>>, vector<1x128xf32>
    %12 = vector.broadcast %11 : vector<1x128xf32> to vector<16x128xf32>
    %13 = arith.addf %10, %12 : vector<16x128xf32>
    %cst_11 = arith.constant 0.000000e+00 : f32
    %14 = vector.broadcast %cst_11 : f32 to vector<16x128xf32>
    %15 = arith.maximumf %13, %14 : vector<16x128xf32>
    %c0_12 = arith.constant 0 : index
    %c0_13 = arith.constant 0 : index
    %16 = vector.load %arg6[%c0_12, %c0_13] : memref<1x128xf32, #tpu.memory_space<vmem>>, vector<1x128xf32>
    %cst_14 = arith.constant dense<0.000000e+00> : vector<1x16xf32>
    %17 = tpu.matmul %16, %15, %cst_14 {dimension_numbers = #tpu.dot_dimension_numbers<[1], [1], [0], [0], [0, 0, 1, 0], [], []>} : vector<1x128xf32>, vector<16x128xf32>, vector<1x16xf32> -> vector<1x16xf32>
    %c0_15 = arith.constant 0 : index
    %c0_16 = arith.constant 0 : index
    %18 = memref.load %arg7[%c0_15, %c0_16] : memref<1x1xf32, #tpu.memory_space<smem>>
    %19 = vector.broadcast %18 : f32 to vector<1x16xf32>
    %20 = arith.addf %17, %19 : vector<1x16xf32>
    %21 = arith.negf %20 : vector<1x16xf32>
    %22 = math.exp %21 : vector<1x16xf32>
    %cst_17 = arith.constant 1.000000e+00 : f32
    %23 = vector.broadcast %cst_17 : f32 to vector<1x16xf32>
    %24 = arith.addf %23, %22 : vector<1x16xf32>
    %25 = arith.divf %23, %24 : vector<1x16xf32>
    %c0_18 = arith.constant 0 : index
    %c0_19 = arith.constant 0 : index
    %26 = vector.load %arg8[%c0_18, %c0_19] : memref<1x16xf32, #tpu.memory_space<vmem>>, vector<1x16xf32>
    tpu.vector_store %arg8[%c0_18, %c0_19], %25 {strides = array<i32>} : memref<1x16xf32, #tpu.memory_space<vmem>>, vector<1x16xf32>,
    return
  }
  func.func @transform_0(%arg0: i32) -> (i32, i32) {
    %c0_i32 = arith.constant 0 : i32
    %c0_i32_0 = arith.constant 0 : i32
    return %arg0, %c0_i32 : i32, i32
  }
  func.func @transform_1(%arg0: i32) -> (i32, i32) {
    %c0_i32 = arith.constant 0 : i32
    %c0_i32_0 = arith.constant 0 : i32
    %c0_i32_1 = arith.constant 0 : i32
    return %c0_i32, %c0_i32_0 : i32, i32
  }
  func.func @transform_2(%arg0: i32) -> (i32, i32) {
    %c0_i32 = arith.constant 0 : i32
    %c0_i32_0 = arith.constant 0 : i32
    %c0_i32_1 = arith.constant 0 : i32
    return %c0_i32, %c0_i32_0 : i32, i32
  }
  func.func @transform_3(%arg0: i32) -> (i32, i32) {
    %c0_i32 = arith.constant 0 : i32
    %c0_i32_0 = arith.constant 0 : i32
    %c0_i32_1 = arith.constant 0 : i32
    return %c0_i32, %c0_i32_0 : i32, i32
  }
  func.func @transform_4(%arg0: i32) -> (i32, i32) {
    %c0_i32 = arith.constant 0 : i32
    %c0_i32_0 = arith.constant 0 : i32
    %c0_i32_1 = arith.constant 0 : i32
    return %c0_i32, %c0_i32_0 : i32, i32
  }
  func.func @transform_5(%arg0: i32) -> (i32, i32) {
    %c0_i32 = arith.constant 0 : i32
    %c0_i32_0 = arith.constant 0 : i32
    %c0_i32_1 = arith.constant 0 : i32
    return %c0_i32, %c0_i32_0 : i32, i32
  }
  func.func @transform_6(%arg0: i32) -> (i32, i32) {
    %c0_i32 = arith.constant 0 : i32
    %c0_i32_0 = arith.constant 0 : i32
    %c0_i32_1 = arith.constant 0 : i32
    return %c0_i32, %c0_i32_0 : i32, i32
  }
  func.func @transform_7(%arg0: i32) -> (i32, i32) {
    %c0_i32 = arith.constant 0 : i32
    %c0_i32_0 = arith.constant 0 : i32
    return %arg0, %c0_i32 : i32, i32
  }
}

</mosaic_0001>

<llo_original>
// kernel: tpu_custom_call.1
$region0: #{tpu_custom_call.1}
  #allocation0 [shape = 'u32[]', space=smem, size = 0x4, offset = 0x4, fixed_abs, tag = 'smem constant byte address 0x4 - core index']
  #allocation1 [shape = 'u32[72,128]{1,0:T(1,128)}', space=vmem, size = 0x9000, scoped, tag = 'internal scratch']
  #allocation2 [shape = 'f32[1,1]{1,0:T(1,128)S(6)}', space=smem, size = 0x200, scoped, tag = 'scoped memory for tpu_custom_call.1']
  %s0 = inlined_call_operand.hbm [shape: bf16[16,773], index: 0, kind: input, shape index: {}]
  %s1 = inlined_call_operand.hbm [shape: bf16[773,256], index: 1, kind: input, shape index: {}]
  %s2 = inlined_call_operand.vmem [shape: f32[1,256], index: 2, kind: input, shape index: {}]
  %s3 = inlined_call_operand.hbm [shape: bf16[256,128], index: 3, kind: input, shape index: {}]
  %s4 = inlined_call_operand.vmem [shape: f32[1,128], index: 4, kind: input, shape index: {}]
  %s5 = inlined_call_operand.vmem [shape: f32[1,128], index: 5, kind: input, shape index: {}]
  %s6 = inlined_call_operand.<no memory space> [shape: f32[1,1], index: 6, kind: input, shape index: {}]
  %s7 = inlined_call_operand.hbm [shape: f32[1,16], index: 7, kind: output, shape index: {}]
  %s8 = sld [smem:[#allocation0]]
  $region50: #{tpu_custom_call.1} parent=0
    _
  %s10 = ssub.s32 1, %s8
  %s11 = scalar_select 0, %s10, %s8
  %12 = sst [smem:[#allocation2]] %s6
  $region1: #{tpu_custom_call.1} parent=0
    #allocation3 [shape = 'u8[28672]{0}', space=vmem, size = 0x7000, scoped, tag = 'input window, operand 0, single buffered']
    #allocation4 [shape = 's32[1]{0}', space=sflag, size = 0x4, scoped, tag = 'scoped memory for tpu_custom_call.1']
    #allocation5 [shape = 's32[1]{0}', space=sflag, size = 0x4, scoped, tag = 'scoped memory for tpu_custom_call.1']
    #allocation6 [shape = 'u8[397312]{0}', space=vmem, size = 0x61000, scoped, tag = 'input window, operand 1, single buffered']
    #allocation7 [shape = 's32[1]{0}', space=sflag, size = 0x4, scoped, tag = 'scoped memory for tpu_custom_call.1']
    #allocation8 [shape = 'u8[65536]{0}', space=vmem, size = 0x10000, scoped, tag = 'input window, operand 3, single buffered']
    #allocation9 [shape = 'u8[512]{0}', space=vmem, size = 0x400, scoped, tag = 'output window, operand 0, single buffered']
    %13 = vsyncpa [#allocation4], 0
    %14 = vsyncpa [#allocation7], 0
    %15 = vsyncpa [#allocation5], 0
    // Predicated region
    $region2: #{tpu_custom_call.1} parent=1 // pred_check
      _
    $region3: #{tpu_custom_call.1} parent=1 // pred_check_branch
      %17 = sbr.rel (0) target = $region5
    $region4: #{tpu_custom_call.1} parent=1 // pred_region
      %19 = vsyncadd [#allocation4], 0
      %s20 = sshll.u32 %s0, 4
      %s21 = int_to_ptr.hbm [resolvable:$true] %s20
      %s22 = sshll.u32 [#allocation3], 4
      %s23 = int_to_ptr.vmem [resolvable:$true] %s22
      %28 = dma.hbm_to_vmem [thread:$0]  %s21, 896, %s23, [#allocation4], 448, 448, 28
    $region5: #{tpu_custom_call.1} parent=1 // pred_fallthru
      _
    // Predicated region
    $region6: #{tpu_custom_call.1} parent=1 // pred_check
      _
    $region7: #{tpu_custom_call.1} parent=1 // pred_check_branch
      %30 = sbr.rel (0) target = $region9
    $region8: #{tpu_custom_call.1} parent=1 // pred_region
      %32 = vsyncadd [#allocation7], 0
      %s33 = sshll.u32 %s1, 4
      %s34 = int_to_ptr.hbm [resolvable:$true] %s33
      %s35 = sshll.u32 [#allocation6], 4
      %s36 = int_to_ptr.vmem [resolvable:$true] %s35
      %41 = dma.hbm_to_vmem [thread:$0]  %s34, 12416, %s36, [#allocation7], 128, 128, 8
    $region9: #{tpu_custom_call.1} parent=1 // pred_fallthru
      _
    // Predicated region
    $region10: #{tpu_custom_call.1} parent=1 // pred_check
      _
    $region11: #{tpu_custom_call.1} parent=1 // pred_check_branch
      %43 = sbr.rel (0) target = $region13
    $region12: #{tpu_custom_call.1} parent=1 // pred_region
      _
    $region13: #{tpu_custom_call.1} parent=1 // pred_fallthru
      _
    // Predicated region
    $region14: #{tpu_custom_call.1} parent=1 // pred_check
      _
    $region15: #{tpu_custom_call.1} parent=1 // pred_check_branch
      %45 = sbr.rel (0) target = $region17
    $region16: #{tpu_custom_call.1} parent=1 // pred_region
      %47 = vsyncadd [#allocation7], 0
      %s48 = sshll.u32 %s3, 4
      %s49 = int_to_ptr.hbm [resolvable:$true] %s48
      %s50 = sshll.u32 [#allocation8], 4
      %s51 = int_to_ptr.vmem [resolvable:$true] %s50
      %56 = dma.hbm_to_vmem [thread:$0]  %s49, 2048, %s51, [#allocation7], 64, 64, 4
    $region17: #{tpu_custom_call.1} parent=1 // pred_fallthru
      _
    // Predicated region
    $region18: #{tpu_custom_call.1} parent=1 // pred_check
      _
    $region19: #{tpu_custom_call.1} parent=1 // pred_check_branch
      %58 = sbr.rel (0) target = $region21
    $region20: #{tpu_custom_call.1} parent=1 // pred_region
      _
    $region21: #{tpu_custom_call.1} parent=1 // pred_fallthru
      _
    // Predicated region
    $region22: #{tpu_custom_call.1} parent=1 // pred_check
      _
    $region23: #{tpu_custom_call.1} parent=1 // pred_check_branch
      %60 = sbr.rel (0) target = $region25
    $region24: #{tpu_custom_call.1} parent=1 // pred_region
      _
    $region25: #{tpu_custom_call.1} parent=1 // pred_fallthru
      _
    // Predicated region
    $region26: #{tpu_custom_call.1} parent=1 // pred_check
      _
    $region27: #{tpu_custom_call.1} parent=1 // pred_check_branch
      %62 = sbr.rel (0) target = $region29
    $region28: #{tpu_custom_call.1} parent=1 // pred_region
      _
    $region29: #{tpu_custom_call.1} parent=1 // pred_fallthru
      _
    // Predicated region
    $region30: #{tpu_custom_call.1} parent=1 // pred_check
      _
    $region31: #{tpu_custom_call.1} parent=1 // pred_check_branch
      %64 = sbr.rel (0) target = $region33
    $region32: #{tpu_custom_call.1} parent=1 // pred_region
      %66 = dma.done [#allocation4], 896
    $region33: #{tpu_custom_call.1} parent=1 // pred_fallthru
      _
    // Predicated region
    $region34: #{tpu_custom_call.1} parent=1 // pred_check
      _
    $region35: #{tpu_custom_call.1} parent=1 // pred_check_branch
      %68 = sbr.rel (0) target = $region37
    $region36: #{tpu_custom_call.1} parent=1 // pred_region
      %70 = dma.done [#allocation7], 12416
    $region37: #{tpu_custom_call.1} parent=1 // pred_fallthru
      _
    // Predicated region
    $region38: #{tpu_custom_call.1} parent=1 // pred_check
      _
    $region39: #{tpu_custom_call.1} parent=1 // pred_check_branch
      %72 = sbr.rel (0) target = $region41
    $region40: #{tpu_custom_call.1} parent=1 // pred_region
      %74 = dma.done [#allocation7], 2048
    $region41: #{tpu_custom_call.1} parent=1 // pred_fallthru
      _
    %v76 = vld [vmem:[#allocation3] sm:$0xff]
    %v77 = vld [vmem:[#allocation3 + $0x8] sm:$0xff]
    %v78 = vld [vmem:[#allocation3 + $0x10] sm:$0xff]
    %v79 = vld [vmem:[#allocation3 + $0x18] sm:$0xf]
    %v80 = vld [vmem:[#allocation3 + $0x1c] sm:$0xff]
    %v81 = vld [vmem:[#allocation3 + $0x24] sm:$0xff]
    %v82 = vld [vmem:[#allocation3 + $0x2c] sm:$0xff]
    %v83 = vld [vmem:[#allocation3 + $0x34] sm:$0xf]
    %v84 = vld [vmem:[#allocation6] sm:$0xff]
    %v85 = vld [vmem:[#allocation6 + $0x8] sm:$0xff]
    %v86 = vld [vmem:[#allocation6 + $0x10] sm:$0xff]
    %v87 = vld [vmem:[#allocation6 + $0x18] sm:$0xff]
    %v88 = vld [vmem:[#allocation6 + $0x20] sm:$0xff]
    %v89 = vld [vmem:[#allocation6 + $0x28] sm:$0xff]
    %v90 = vld [vmem:[#allocation6 + $0x30] sm:$0xff]
    %v91 = vld [vmem:[#allocation6 + $0x38] sm:$0xff]
    %v92 = vld [vmem:[#allocation6 + $0x40] sm:$0xff]
    %v93 = vld [vmem:[#allocation6 + $0x48] sm:$0xff]
    %v94 = vld [vmem:[#allocation6 + $0x50] sm:$0xff]
    %v95 = vld [vmem:[#allocation6 + $0x58] sm:$0xff]
    %v96 = vld [vmem:[#allocation6 + $0x60] sm:$0xff]
    %v97 = vld [vmem:[#allocation6 + $0x68] sm:$0xff]
    %v98 = vld [vmem:[#allocation6 + $0x70] sm:$0xff]
    %v99 = vld [vmem:[#allocation6 + $0x78] sm:$0xff]
    %v100 = vld [vmem:[#allocation6 + $0x80] sm:$0xff]
    %v101 = vld [vmem:[#allocation6 + $0x88] sm:$0xff]
    %v102 = vld [vmem:[#allocation6 + $0x90] sm:$0xff]
    %v103 = vld [vmem:[#allocation6 + $0x98] sm:$0xff]
    %v104 = vld [vmem:[#allocation6 + $0xa0] sm:$0xff]
    %v105 = vld [vmem:[#allocation6 + $0xa8] sm:$0xff]
    %v106 = vld [vmem:[#allocation6 + $0xb0] sm:$0xff]
    %v107 = vld [vmem:[#allocation6 + $0xb8] sm:$0xff]
    %v108 = vld [vmem:[#allocation6 + $0xc0] sm:$0xff]
    %v109 = vld [vmem:[#allocation6 + $0xc8] sm:$0xff]
    %v110 = vld [vmem:[#allocation6 + $0xd0] sm:$0xff]
    %v111 = vld [vmem:[#allocation6 + $0xd8] sm:$0xff]
    %v112 = vld [vmem:[#allocation6 + $0xe0] sm:$0xff]
    %v113 = vld [vmem:[#allocation6 + $0xe8] sm:$0xff]
    %v114 = vld [vmem:[#allocation6 + $0xf0] sm:$0xff]
    %v115 = vld [vmem:[#allocation6 + $0xf8] sm:$0xff]
    %v116 = vld [vmem:[#allocation6 + $0x100] sm:$0xff]
    %v117 = vld [vmem:[#allocation6 + $0x108] sm:$0xff]
    %v118 = vld [vmem:[#allocation6 + $0x110] sm:$0xff]
    %v119 = vld [vmem:[#allocation6 + $0x118] sm:$0xff]
    %v120 = vld [vmem:[#allocation6 + $0x120] sm:$0xff]
    %v121 = vld [vmem:[#allocation6 + $0x128] sm:$0xff]
    %v122 = vld [vmem:[#allocation6 + $0x130] sm:$0xff]
    %v123 = vld [vmem:[#allocation6 + $0x138] sm:$0xff]
    %v124 = vld [vmem:[#allocation6 + $0x140] sm:$0xff]
    %v125 = vld [vmem:[#allocation6 + $0x148] sm:$0xff]
    %v126 = vld [vmem:[#allocation6 + $0x150] sm:$0xff]
    %v127 = vld [vmem:[#allocation6 + $0x158] sm:$0xff]
    %v128 = vld [vmem:[#allocation6 + $0x160] sm:$0xff]
    %v129 = vld [vmem:[#allocation6 + $0x168] sm:$0xff]
    %v130 = vld [vmem:[#allocation6 + $0x170] sm:$0xff]
    %v131 = vld [vmem:[#allocation6 + $0x178] sm:$0xff]
    %v132 = vld [vmem:[#allocation6 + $0x180] sm:$0xff]
    %v133 = vld [vmem:[#allocation6 + $0x188] sm:$0xff]
    %v134 = vld [vmem:[#allocation6 + $0x190] sm:$0xff]
    %v135 = vld [vmem:[#allocation6 + $0x198] sm:$0xff]
    %v136 = vld [vmem:[#allocation6 + $0x1a0] sm:$0xff]
    %v137 = vld [vmem:[#allocation6 + $0x1a8] sm:$0xff]
    %v138 = vld [vmem:[#allocation6 + $0x1b0] sm:$0xff]
    %v139 = vld [vmem:[#allocation6 + $0x1b8] sm:$0xff]
    %v140 = vld [vmem:[#allocation6 + $0x1c0] sm:$0xff]
    %v141 = vld [vmem:[#allocation6 + $0x1c8] sm:$0xff]
    %v142 = vld [vmem:[#allocation6 + $0x1d0] sm:$0xff]
    %v143 = vld [vmem:[#allocation6 + $0x1d8] sm:$0xff]
    %v144 = vld [vmem:[#allocation6 + $0x1e0] sm:$0xff]
    %v145 = vld [vmem:[#allocation6 + $0x1e8] sm:$0xff]
    %v146 = vld [vmem:[#allocation6 + $0x1f0] sm:$0xff]
    %v147 = vld [vmem:[#allocation6 + $0x1f8] sm:$0xff]
    %v148 = vld [vmem:[#allocation6 + $0x200] sm:$0xff]
    %v149 = vld [vmem:[#allocation6 + $0x208] sm:$0xff]
    %v150 = vld [vmem:[#allocation6 + $0x210] sm:$0xff]
    %v151 = vld [vmem:[#allocation6 + $0x218] sm:$0xff]
    %v152 = vld [vmem:[#allocation6 + $0x220] sm:$0xff]
    %v153 = vld [vmem:[#allocation6 + $0x228] sm:$0xff]
    %v154 = vld [vmem:[#allocation6 + $0x230] sm:$0xff]
    %v155 = vld [vmem:[#allocation6 + $0x238] sm:$0xff]
    %v156 = vld [vmem:[#allocation6 + $0x240] sm:$0xff]
    %v157 = vld [vmem:[#allocation6 + $0x248] sm:$0xff]
    %v158 = vld [vmem:[#allocation6 + $0x250] sm:$0xff]
    %v159 = vld [vmem:[#allocation6 + $0x258] sm:$0xff]
    %v160 = vld [vmem:[#allocation6 + $0x260] sm:$0xff]
    %v161 = vld [vmem:[#allocation6 + $0x268] sm:$0xff]
    %v162 = vld [vmem:[#allocation6 + $0x270] sm:$0xff]
    %v163 = vld [vmem:[#allocation6 + $0x278] sm:$0xff]
    %v164 = vld [vmem:[#allocation6 + $0x280] sm:$0xff]
    %v165 = vld [vmem:[#allocation6 + $0x288] sm:$0xff]
    %v166 = vld [vmem:[#allocation6 + $0x290] sm:$0xff]
    %v167 = vld [vmem:[#allocation6 + $0x298] sm:$0xff]
    %v168 = vld [vmem:[#allocation6 + $0x2a0] sm:$0xff]
    %v169 = vld [vmem:[#allocation6 + $0x2a8] sm:$0xff]
    %v170 = vld [vmem:[#allocation6 + $0x2b0] sm:$0xff]
    %v171 = vld [vmem:[#allocation6 + $0x2b8] sm:$0xff]
    %v172 = vld [vmem:[#allocation6 + $0x2c0] sm:$0xff]
    %v173 = vld [vmem:[#allocation6 + $0x2c8] sm:$0xff]
    %v174 = vld [vmem:[#allocation6 + $0x2d0] sm:$0xff]
    %v175 = vld [vmem:[#allocation6 + $0x2d8] sm:$0xff]
    %v176 = vld [vmem:[#allocation6 + $0x2e0] sm:$0xff]
    %v177 = vld [vmem:[#allocation6 + $0x2e8] sm:$0xff]
    %v178 = vld [vmem:[#allocation6 + $0x2f0] sm:$0xff]
    %v179 = vld [vmem:[#allocation6 + $0x2f8] sm:$0xff]
    %v180 = vld [vmem:[#allocation6 + $0x300] sm:$0x77]
    %v181 = vld [vmem:[%s2] sm:$0x3]
    %v183 = vperm.slane %v181, 0
    %v184 = vperm.slane %v181, 1
    %v195 = vunpack.c.l.b16 %v76
    %v196 = vunpack.c.h.b16 %v76
    %v197 = vunpack.c.l.b16 %v77
    %v198 = vunpack.c.h.b16 %v77
    %v199 = vunpack.c.l.b16 %v78
    %v200 = vunpack.c.h.b16 %v78
    %v201 = vunpack.c.l.b16 %v79
    %v202 = vunpack.c.l.b16 %v80
    %v203 = vunpack.c.h.b16 %v80
    %v204 = vunpack.c.l.b16 %v81
    %v205 = vunpack.c.h.b16 %v81
    %v206 = vunpack.c.l.b16 %v82
    %v207 = vunpack.c.h.b16 %v82
    %v208 = vunpack.c.l.b16 %v83
    %v209 = vpack.c.b16 %v202, %v195
    %v210 = vpack.c.b16 %v203, %v196
    %v211 = vpack.c.b16 %v204, %v197
    %v212 = vpack.c.b16 %v205, %v198
    %v213 = vpack.c.b16 %v206, %v199
    %v214 = vpack.c.b16 %v207, %v200
    %v215 = vpack.c.b16 %v208, %v201
    %v319 = vunpack.c.l.b16 %v84
    %v320 = vunpack.c.h.b16 %v84
    %v321 = vunpack.c.l.b16 %v85
    %v322 = vunpack.c.h.b16 %v85
    %v323 = vunpack.c.l.b16 %v86
    %v324 = vunpack.c.h.b16 %v86
    %v325 = vunpack.c.l.b16 %v87
    %v326 = vunpack.c.h.b16 %v87
    %v327 = vunpack.c.l.b16 %v88
    %v328 = vunpack.c.h.b16 %v88
    %v329 = vunpack.c.l.b16 %v89
    %v330 = vunpack.c.h.b16 %v89
    %v331 = vunpack.c.l.b16 %v90
    %v332 = vunpack.c.h.b16 %v90
    %v333 = vunpack.c.l.b16 %v91
    %v334 = vunpack.c.h.b16 %v91
    %v335 = vunpack.c.l.b16 %v92
    %v336 = vunpack.c.h.b16 %v92
    %v337 = vunpack.c.l.b16 %v93
    %v338 = vunpack.c.h.b16 %v93
    %v339 = vunpack.c.l.b16 %v94
    %v340 = vunpack.c.h.b16 %v94
    %v341 = vunpack.c.l.b16 %v95
    %v342 = vunpack.c.h.b16 %v95
    %v343 = vunpack.c.l.b16 %v96
    %v344 = vunpack.c.h.b16 %v96
    %v345 = vunpack.c.l.b16 %v97
    %v346 = vunpack.c.h.b16 %v97
    %v347 = vunpack.c.l.b16 %v98
    %v348 = vunpack.c.h.b16 %v98
    %v349 = vunpack.c.l.b16 %v99
    %v350 = vunpack.c.h.b16 %v99
    %v351 = vunpack.c.l.b16 %v100
    %v352 = vunpack.c.h.b16 %v100
    %v353 = vunpack.c.l.b16 %v101
    %v354 = vunpack.c.h.b16 %v101
    %v355 = vunpack.c.l.b16 %v102
    %v356 = vunpack.c.h.b16 %v102
    %v357 = vunpack.c.l.b16 %v103
    %v358 = vunpack.c.h.b16 %v103
    %v359 = vunpack.c.l.b16 %v104
    %v360 = vunpack.c.h.b16 %v104
    %v361 = vunpack.c.l.b16 %v105
    %v362 = vunpack.c.h.b16 %v105
    %v363 = vunpack.c.l.b16 %v106
    %v364 = vunpack.c.h.b16 %v106
    %v365 = vunpack.c.l.b16 %v107
    %v366 = vunpack.c.h.b16 %v107
    %v367 = vunpack.c.l.b16 %v108
    %v368 = vunpack.c.h.b16 %v108
    %v369 = vunpack.c.l.b16 %v109
    %v370 = vunpack.c.h.b16 %v109
    %v371 = vunpack.c.l.b16 %v110
    %v372 = vunpack.c.h.b16 %v110
    %v373 = vunpack.c.l.b16 %v111
    %v374 = vunpack.c.h.b16 %v111
    %v375 = vunpack.c.l.b16 %v112
    %v376 = vunpack.c.h.b16 %v112
    %v377 = vunpack.c.l.b16 %v113
    %v378 = vunpack.c.h.b16 %v113
    %v379 = vunpack.c.l.b16 %v114
    %v380 = vunpack.c.h.b16 %v114
    %v381 = vunpack.c.l.b16 %v115
    %v382 = vunpack.c.h.b16 %v115
    %v383 = vunpack.c.l.b16 %v116
    %v384 = vunpack.c.h.b16 %v116
    %v385 = vunpack.c.l.b16 %v117
    %v386 = vunpack.c.h.b16 %v117
    %v387 = vunpack.c.l.b16 %v118
    %v388 = vunpack.c.h.b16 %v118
    %v389 = vunpack.c.l.b16 %v119
    %v390 = vunpack.c.h.b16 %v119
    %v391 = vunpack.c.l.b16 %v120
    %v392 = vunpack.c.h.b16 %v120
    %v393 = vunpack.c.l.b16 %v121
    %v394 = vunpack.c.h.b16 %v121
    %v395 = vunpack.c.l.b16 %v122
    %v396 = vunpack.c.h.b16 %v122
    %v397 = vunpack.c.l.b16 %v123
    %v398 = vunpack.c.h.b16 %v123
    %v399 = vunpack.c.l.b16 %v124
    %v400 = vunpack.c.h.b16 %v124
    %v401 = vunpack.c.l.b16 %v125
    %v402 = vunpack.c.h.b16 %v125
    %v403 = vunpack.c.l.b16 %v126
    %v404 = vunpack.c.h.b16 %v126
    %v405 = vunpack.c.l.b16 %v127
    %v406 = vunpack.c.h.b16 %v127
    %v407 = vunpack.c.l.b16 %v128
    %v408 = vunpack.c.h.b16 %v128
    %v409 = vunpack.c.l.b16 %v129
    %v410 = vunpack.c.h.b16 %v129
    %v411 = vunpack.c.l.b16 %v130
    %v412 = vunpack.c.h.b16 %v130
    %v413 = vunpack.c.l.b16 %v131
    %v414 = vunpack.c.h.b16 %v131
    %v415 = vunpack.c.l.b16 %v132
    %v416 = vunpack.c.h.b16 %v132
    %v417 = vunpack.c.l.b16 %v133
    %v418 = vunpack.c.h.b16 %v133
    %v419 = vunpack.c.l.b16 %v134
    %v420 = vunpack.c.h.b16 %v134
    %v421 = vunpack.c.l.b16 %v135
    %v422 = vunpack.c.h.b16 %v135
    %v423 = vunpack.c.l.b16 %v136
    %v424 = vunpack.c.h.b16 %v136
    %v425 = vunpack.c.l.b16 %v137
    %v426 = vunpack.c.h.b16 %v137
    %v427 = vunpack.c.l.b16 %v138
    %v428 = vunpack.c.h.b16 %v138
    %v429 = vunpack.c.l.b16 %v139
    %v430 = vunpack.c.h.b16 %v139
    %v431 = vunpack.c.l.b16 %v140
    %v432 = vunpack.c.h.b16 %v140
    %v433 = vunpack.c.l.b16 %v141
    %v434 = vunpack.c.h.b16 %v141
    %v435 = vunpack.c.l.b16 %v142
    %v436 = vunpack.c.h.b16 %v142
    %v437 = vunpack.c.l.b16 %v143
    %v438 = vunpack.c.h.b16 %v143
    %v439 = vunpack.c.l.b16 %v144
    %v440 = vunpack.c.h.b16 %v144
    %v441 = vunpack.c.l.b16 %v145
    %v442 = vunpack.c.h.b16 %v145
    %v443 = vunpack.c.l.b16 %v146
    %v444 = vunpack.c.h.b16 %v146
    %v445 = vunpack.c.l.b16 %v147
    %v446 = vunpack.c.h.b16 %v147
    %v447 = vunpack.c.l.b16 %v148
    %v448 = vunpack.c.h.b16 %v148
    %v449 = vunpack.c.l.b16 %v149
    %v450 = vunpack.c.h.b16 %v149
    %v451 = vunpack.c.l.b16 %v150
    %v452 = vunpack.c.h.b16 %v150
    %v453 = vunpack.c.l.b16 %v151
    %v454 = vunpack.c.h.b16 %v151
    %v455 = vunpack.c.l.b16 %v152
    %v456 = vunpack.c.h.b16 %v152
    %v457 = vunpack.c.l.b16 %v153
    %v458 = vunpack.c.h.b16 %v153
    %v459 = vunpack.c.l.b16 %v154
    %v460 = vunpack.c.h.b16 %v154
    %v461 = vunpack.c.l.b16 %v155
    %v462 = vunpack.c.h.b16 %v155
    %v463 = vunpack.c.l.b16 %v156
    %v464 = vunpack.c.h.b16 %v156
    %v465 = vunpack.c.l.b16 %v157
    %v466 = vunpack.c.h.b16 %v157
    %v467 = vunpack.c.l.b16 %v158
    %v468 = vunpack.c.h.b16 %v158
    %v469 = vunpack.c.l.b16 %v159
    %v470 = vunpack.c.h.b16 %v159
    %v471 = vunpack.c.l.b16 %v160
    %v472 = vunpack.c.h.b16 %v160
    %v473 = vunpack.c.l.b16 %v161
    %v474 = vunpack.c.h.b16 %v161
    %v475 = vunpack.c.l.b16 %v162
    %v476 = vunpack.c.h.b16 %v162
    %v477 = vunpack.c.l.b16 %v163
    %v478 = vunpack.c.h.b16 %v163
    %v479 = vunpack.c.l.b16 %v164
    %v480 = vunpack.c.h.b16 %v164
    %v481 = vunpack.c.l.b16 %v165
    %v482 = vunpack.c.h.b16 %v165
    %v483 = vunpack.c.l.b16 %v166
    %v484 = vunpack.c.h.b16 %v166
    %v485 = vunpack.c.l.b16 %v167
    %v486 = vunpack.c.h.b16 %v167
    %v487 = vunpack.c.l.b16 %v168
    %v488 = vunpack.c.h.b16 %v168
    %v489 = vunpack.c.l.b16 %v169
    %v490 = vunpack.c.h.b16 %v169
    %v491 = vunpack.c.l.b16 %v170
    %v492 = vunpack.c.h.b16 %v170
    %v493 = vunpack.c.l.b16 %v171
    %v494 = vunpack.c.h.b16 %v171
    %v495 = vunpack.c.l.b16 %v172
    %v496 = vunpack.c.h.b16 %v172
    %v497 = vunpack.c.l.b16 %v173
    %v498 = vunpack.c.h.b16 %v173
    %v499 = vunpack.c.l.b16 %v174
    %v500 = vunpack.c.h.b16 %v174
    %v501 = vunpack.c.l.b16 %v175
    %v502 = vunpack.c.h.b16 %v175
    %v503 = vunpack.c.l.b16 %v176
    %v504 = vunpack.c.h.b16 %v176
    %v505 = vunpack.c.l.b16 %v177
    %v506 = vunpack.c.h.b16 %v177
    %v507 = vunpack.c.l.b16 %v178
    %v508 = vunpack.c.h.b16 %v178
    %v509 = vunpack.c.l.b16 %v179
    %v510 = vunpack.c.h.b16 %v179
    %v511 = vunpack.c.l.b16 %v180
    %v512 = vunpack.c.h.b16 %v180
    %v513 = vpack.c.b16 %v321, %v319
    %v514 = vpack.c.b16 %v322, %v320
    %v515 = vpack.c.b16 %v325, %v323
    %v516 = vpack.c.b16 %v326, %v324
    %v517 = vpack.c.b16 %v329, %v327
    %v518 = vpack.c.b16 %v330, %v328
    %v519 = vpack.c.b16 %v333, %v331
    %v520 = vpack.c.b16 %v334, %v332
    %v521 = vpack.c.b16 %v337, %v335
    %v522 = vpack.c.b16 %v338, %v336
    %v523 = vpack.c.b16 %v341, %v339
    %v524 = vpack.c.b16 %v342, %v340
    %v525 = vpack.c.b16 %v345, %v343
    %v526 = vpack.c.b16 %v346, %v344
    %v527 = vpack.c.b16 %v349, %v347
    %v528 = vpack.c.b16 %v350, %v348
    %v529 = vpack.c.b16 %v353, %v351
    %v530 = vpack.c.b16 %v354, %v352
    %v531 = vpack.c.b16 %v357, %v355
    %v532 = vpack.c.b16 %v358, %v356
    %v533 = vpack.c.b16 %v361, %v359
    %v534 = vpack.c.b16 %v362, %v360
    %v535 = vpack.c.b16 %v365, %v363
    %v536 = vpack.c.b16 %v366, %v364
    %v537 = vpack.c.b16 %v369, %v367
    %v538 = vpack.c.b16 %v370, %v368
    %v539 = vpack.c.b16 %v373, %v371
    %v540 = vpack.c.b16 %v374, %v372
    %v541 = vpack.c.b16 %v377, %v375
    %v542 = vpack.c.b16 %v378, %v376
    %v543 = vpack.c.b16 %v381, %v379
    %v544 = vpack.c.b16 %v382, %v380
    %v545 = vpack.c.b16 %v385, %v383
    %v546 = vpack.c.b16 %v386, %v384
    %v547 = vpack.c.b16 %v389, %v387
    %v548 = vpack.c.b16 %v390, %v388
    %v549 = vpack.c.b16 %v393, %v391
    %v550 = vpack.c.b16 %v394, %v392
    %v551 = vpack.c.b16 %v397, %v395
    %v552 = vpack.c.b16 %v398, %v396
    %v553 = vpack.c.b16 %v401, %v399
    %v554 = vpack.c.b16 %v402, %v400
    %v555 = vpack.c.b16 %v405, %v403
    %v556 = vpack.c.b16 %v406, %v404
    %v557 = vpack.c.b16 %v409, %v407
    %v558 = vpack.c.b16 %v410, %v408
    %v559 = vpack.c.b16 %v413, %v411
    %v560 = vpack.c.b16 %v414, %v412
    %v561 = vpack.c.b16 %v417, %v415
    %v562 = vpack.c.b16 %v418, %v416
    %v563 = vpack.c.b16 %v421, %v419
    %v564 = vpack.c.b16 %v422, %v420
    %v565 = vpack.c.b16 %v425, %v423
    %v566 = vpack.c.b16 %v426, %v424
    %v567 = vpack.c.b16 %v429, %v427
    %v568 = vpack.c.b16 %v430, %v428
    %v569 = vpack.c.b16 %v433, %v431
    %v570 = vpack.c.b16 %v434, %v432
    %v571 = vpack.c.b16 %v437, %v435
    %v572 = vpack.c.b16 %v438, %v436
    %v573 = vpack.c.b16 %v441, %v439
    %v574 = vpack.c.b16 %v442, %v440
    %v575 = vpack.c.b16 %v445, %v443
    %v576 = vpack.c.b16 %v446, %v444
    %v577 = vpack.c.b16 %v449, %v447
    %v578 = vpack.c.b16 %v450, %v448
    %v579 = vpack.c.b16 %v453, %v451
    %v580 = vpack.c.b16 %v454, %v452
    %v581 = vpack.c.b16 %v457, %v455
    %v582 = vpack.c.b16 %v458, %v456
    %v583 = vpack.c.b16 %v461, %v459
    %v584 = vpack.c.b16 %v462, %v460
    %v585 = vpack.c.b16 %v465, %v463
    %v586 = vpack.c.b16 %v466, %v464
    %v587 = vpack.c.b16 %v469, %v467
    %v588 = vpack.c.b16 %v470, %v468
    %v589 = vpack.c.b16 %v473, %v471
    %v590 = vpack.c.b16 %v474, %v472
    %v591 = vpack.c.b16 %v477, %v475
    %v592 = vpack.c.b16 %v478, %v476
    %v593 = vpack.c.b16 %v481, %v479
    %v594 = vpack.c.b16 %v482, %v480
    %v595 = vpack.c.b16 %v485, %v483
    %v596 = vpack.c.b16 %v486, %v484
    %v597 = vpack.c.b16 %v489, %v487
    %v598 = vpack.c.b16 %v490, %v488
    %v599 = vpack.c.b16 %v493, %v491
    %v600 = vpack.c.b16 %v494, %v492
    %v601 = vpack.c.b16 %v497, %v495
    %v602 = vpack.c.b16 %v498, %v496
    %v603 = vpack.c.b16 %v501, %v499
    %v604 = vpack.c.b16 %v502, %v500
    %v605 = vpack.c.b16 %v505, %v503
    %v606 = vpack.c.b16 %v506, %v504
    %v607 = vpack.c.b16 %v509, %v507
    %v608 = vpack.c.b16 %v510, %v508
    %v609 = vpack.c.b16 %v511, %v511
    %v610 = vpack.c.b16 %v512, %v512
    %vm707 = vcmask 39936
    %v709 = vsel %vm707, %v215, 0
    %vm711 = vcmask 1041408
    %vm712 = vcmask 1042432
    %v713 = vsel %vm711, 4294967295, 65535
    %v714 = vsel %vm712, %v713, 0
    %v716 = vand.u32 %v609, %v714
    %v719 = vand.u32 %v610, %v714
    %721 = vmatpush.bf16.msra.mxu0 %v527
    %722 = vmatpush.bf16.msra.mxu0 %v525
    %723 = vmatpush.bf16.msra.mxu0 %v523
    %724 = vmatpush.bf16.msra.mxu0 %v521
    %725 = vmatpush.bf16.msra.mxu0 %v519
    %726 = vmatpush.bf16.msra.mxu0 %v517
    %727 = vmatpush.bf16.msra.mxu0 %v515
    %728 = vmatpush.bf16.msra.mxu0 %v513
    %729 = vmatmul.bf16.gmra.mxu0 %v209
    %v730 = vpop.f32.mrf.mxu0
    %v731 = vadd.f32 %v183, %v730
    %v732 = vpop.f32.mrf.mxu0
    %v733 = vadd.f32 %v183, %v732
    %734 = vdwg.mxu0
    %735 = vmatpush.bf16.msra.mxu0 %v543
    %736 = vmatpush.bf16.msra.mxu0 %v541
    %737 = vmatpush.bf16.msra.mxu0 %v539
    %738 = vmatpush.bf16.msra.mxu0 %v537
    %739 = vmatpush.bf16.msra.mxu0 %v535
    %740 = vmatpush.bf16.msra.mxu0 %v533
    %741 = vmatpush.bf16.msra.mxu0 %v531
    %742 = vmatpush.bf16.msra.mxu0 %v529
    %743 = vmatmul.bf16.gmra.mxu0 %v210
    %v744 = vpop.f32.mrf.mxu0
    %v745 = vadd.f32 %v731, %v744
    %v746 = vpop.f32.mrf.mxu0
    %v747 = vadd.f32 %v733, %v746
    %748 = vdwg.mxu0
    %749 = vmatpush.bf16.msra.mxu0 %v559
    %750 = vmatpush.bf16.msra.mxu0 %v557
    %751 = vmatpush.bf16.msra.mxu0 %v555
    %752 = vmatpush.bf16.msra.mxu0 %v553
    %753 = vmatpush.bf16.msra.mxu0 %v551
    %754 = vmatpush.bf16.msra.mxu0 %v549
    %755 = vmatpush.bf16.msra.mxu0 %v547
    %756 = vmatpush.bf16.msra.mxu0 %v545
    %757 = vmatmul.bf16.gmra.mxu0 %v211
    %v758 = vpop.f32.mrf.mxu0
    %v759 = vadd.f32 %v745, %v758
    %v760 = vpop.f32.mrf.mxu0
    %v761 = vadd.f32 %v747, %v760
    %762 = vdwg.mxu0
    %763 = vmatpush.bf16.msra.mxu0 %v575
    %764 = vmatpush.bf16.msra.mxu0 %v573
    %765 = vmatpush.bf16.msra.mxu0 %v571
    %766 = vmatpush.bf16.msra.mxu0 %v569
    %767 = vmatpush.bf16.msra.mxu0 %v567
    %768 = vmatpush.bf16.msra.mxu0 %v565
    %769 = vmatpush.bf16.msra.mxu0 %v563
    %770 = vmatpush.bf16.msra.mxu0 %v561
    %771 = vmatmul.bf16.gmra.mxu0 %v212
    %v772 = vpop.f32.mrf.mxu0
    %v773 = vadd.f32 %v759, %v772
    %v774 = vpop.f32.mrf.mxu0
    %v775 = vadd.f32 %v761, %v774
    %776 = vdwg.mxu0
    %777 = vmatpush.bf16.msra.mxu0 %v591
    %778 = vmatpush.bf16.msra.mxu0 %v589
    %779 = vmatpush.bf16.msra.mxu0 %v587
    %780 = vmatpush.bf16.msra.mxu0 %v585
    %781 = vmatpush.bf16.msra.mxu0 %v583
    %782 = vmatpush.bf16.msra.mxu0 %v581
    %783 = vmatpush.bf16.msra.mxu0 %v579
    %784 = vmatpush.bf16.msra.mxu0 %v577
    %785 = vmatmul.bf16.gmra.mxu0 %v213
    %v786 = vpop.f32.mrf.mxu0
    %v787 = vadd.f32 %v773, %v786
    %v788 = vpop.f32.mrf.mxu0
    %v789 = vadd.f32 %v775, %v788
    %790 = vdwg.mxu0
    %791 = vmatpush.bf16.msra.mxu0 %v607
    %792 = vmatpush.bf16.msra.mxu0 %v605
    %793 = vmatpush.bf16.msra.mxu0 %v603
    %794 = vmatpush.bf16.msra.mxu0 %v601
    %795 = vmatpush.bf16.msra.mxu0 %v599
    %796 = vmatpush.bf16.msra.mxu0 %v597
    %797 = vmatpush.bf16.msra.mxu0 %v595
    %798 = vmatpush.bf16.msra.mxu0 %v593
    %799 = vmatmul.bf16.gmra.mxu0 %v214
    %v800 = vpop.f32.mrf.mxu0
    %v801 = vadd.f32 %v787, %v800
    %v802 = vpop.f32.mrf.mxu0
    %v803 = vadd.f32 %v789, %v802
    %804 = vdwg.mxu0
    %805 = vmatpush.bf16.msra.mxu0 0
    %806 = vmatpush.bf16.msra.mxu0 0
    %807 = vmatpush.bf16.msra.mxu0 0
    %808 = vmatpush.bf16.msra.mxu0 0
    %809 = vmatpush.bf16.msra.mxu0 0
    %810 = vmatpush.bf16.msra.mxu0 0
    %811 = vmatpush.bf16.msra.mxu0 0
    %812 = vmatpush.bf16.msra.mxu0 %v716
    %813 = vmatmul.bf16.gmra.mxu0 %v709
    %v814 = vpop.f32.mrf.mxu0
    %v815 = vadd.f32 %v801, %v814
    %v816 = vpop.f32.mrf.mxu0
    %v817 = vadd.f32 %v803, %v816
    %818 = vdwg.mxu0
    %819 = vmatpush.bf16.msra.mxu0 %v528
    %820 = vmatpush.bf16.msra.mxu0 %v526
    %821 = vmatpush.bf16.msra.mxu0 %v524
    %822 = vmatpush.bf16.msra.mxu0 %v522
    %823 = vmatpush.bf16.msra.mxu0 %v520
    %824 = vmatpush.bf16.msra.mxu0 %v518
    %825 = vmatpush.bf16.msra.mxu0 %v516
    %826 = vmatpush.bf16.msra.mxu0 %v514
    %827 = vmatmul.bf16.gmra.mxu0 %v209
    %v828 = vpop.f32.mrf.mxu0
    %v829 = vadd.f32 %v184, %v828
    %v830 = vpop.f32.mrf.mxu0
    %v831 = vadd.f32 %v184, %v830
    %832 = vdwg.mxu0
    %833 = vmatpush.bf16.msra.mxu0 %v544
    %834 = vmatpush.bf16.msra.mxu0 %v542
    %835 = vmatpush.bf16.msra.mxu0 %v540
    %836 = vmatpush.bf16.msra.mxu0 %v538
    %837 = vmatpush.bf16.msra.mxu0 %v536
    %838 = vmatpush.bf16.msra.mxu0 %v534
    %839 = vmatpush.bf16.msra.mxu0 %v532
    %840 = vmatpush.bf16.msra.mxu0 %v530
    %841 = vmatmul.bf16.gmra.mxu0 %v210
    %v842 = vpop.f32.mrf.mxu0
    %v843 = vadd.f32 %v829, %v842
    %v844 = vpop.f32.mrf.mxu0
    %v845 = vadd.f32 %v831, %v844
    %846 = vdwg.mxu0
    %847 = vmatpush.bf16.msra.mxu0 %v560
    %848 = vmatpush.bf16.msra.mxu0 %v558
    %849 = vmatpush.bf16.msra.mxu0 %v556
    %850 = vmatpush.bf16.msra.mxu0 %v554
    %851 = vmatpush.bf16.msra.mxu0 %v552
    %852 = vmatpush.bf16.msra.mxu0 %v550
    %853 = vmatpush.bf16.msra.mxu0 %v548
    %854 = vmatpush.bf16.msra.mxu0 %v546
    %855 = vmatmul.bf16.gmra.mxu0 %v211
    %v856 = vpop.f32.mrf.mxu0
    %v857 = vadd.f32 %v843, %v856
    %v858 = vpop.f32.mrf.mxu0
    %v859 = vadd.f32 %v845, %v858
    %860 = vdwg.mxu0
    %861 = vmatpush.bf16.msra.mxu0 %v576
    %862 = vmatpush.bf16.msra.mxu0 %v574
    %863 = vmatpush.bf16.msra.mxu0 %v572
    %864 = vmatpush.bf16.msra.mxu0 %v570
    %865 = vmatpush.bf16.msra.mxu0 %v568
    %866 = vmatpush.bf16.msra.mxu0 %v566
    %867 = vmatpush.bf16.msra.mxu0 %v564
    %868 = vmatpush.bf16.msra.mxu0 %v562
    %869 = vmatmul.bf16.gmra.mxu0 %v212
    %v870 = vpop.f32.mrf.mxu0
    %v871 = vadd.f32 %v857, %v870
    %v872 = vpop.f32.mrf.mxu0
    %v873 = vadd.f32 %v859, %v872
    %874 = vdwg.mxu0
    %875 = vmatpush.bf16.msra.mxu0 %v592
    %876 = vmatpush.bf16.msra.mxu0 %v590
    %877 = vmatpush.bf16.msra.mxu0 %v588
    %878 = vmatpush.bf16.msra.mxu0 %v586
    %879 = vmatpush.bf16.msra.mxu0 %v584
    %880 = vmatpush.bf16.msra.mxu0 %v582
    %881 = vmatpush.bf16.msra.mxu0 %v580
    %882 = vmatpush.bf16.msra.mxu0 %v578
    %883 = vmatmul.bf16.gmra.mxu0 %v213
    %v884 = vpop.f32.mrf.mxu0
    %v885 = vadd.f32 %v871, %v884
    %v886 = vpop.f32.mrf.mxu0
    %v887 = vadd.f32 %v873, %v886
    %888 = vdwg.mxu0
    %889 = vmatpush.bf16.msra.mxu0 %v608
    %890 = vmatpush.bf16.msra.mxu0 %v606
    %891 = vmatpush.bf16.msra.mxu0 %v604
    %892 = vmatpush.bf16.msra.mxu0 %v602
    %893 = vmatpush.bf16.msra.mxu0 %v600
    %894 = vmatpush.bf16.msra.mxu0 %v598
    %895 = vmatpush.bf16.msra.mxu0 %v596
    %896 = vmatpush.bf16.msra.mxu0 %v594
    %897 = vmatmul.bf16.gmra.mxu0 %v214
    %v898 = vpop.f32.mrf.mxu0
    %v899 = vadd.f32 %v885, %v898
    %v900 = vpop.f32.mrf.mxu0
    %v901 = vadd.f32 %v887, %v900
    %902 = vdwg.mxu0
    %903 = vmatpush.bf16.msra.mxu0 0
    %904 = vmatpush.bf16.msra.mxu0 0
    %905 = vmatpush.bf16.msra.mxu0 0
    %906 = vmatpush.bf16.msra.mxu0 0
    %907 = vmatpush.bf16.msra.mxu0 0
    %908 = vmatpush.bf16.msra.mxu0 0
    %909 = vmatpush.bf16.msra.mxu0 0
    %910 = vmatpush.bf16.msra.mxu0 %v719
    %911 = vmatmul.bf16.gmra.mxu0 %v709
    %v912 = vpop.f32.mrf.mxu0
    %v913 = vadd.f32 %v899, %v912
    %v914 = vpop.f32.mrf.mxu0
    %v915 = vadd.f32 %v901, %v914
    %916 = vdwg.mxu0
    %v917 = vmax.f32 %v815, 0.0
    %v918 = vmax.f32 %v913, 0.0
    %v919 = vmax.f32 %v817, 0.0
    %v920 = vmax.f32 %v915, 0.0
    %v921 = vpack.c.bf16 %v919, %v917
    %v922 = vpack.c.bf16 %v920, %v918
    %v923 = vld [vmem:[#allocation8] sm:$0xf]
    %v924 = vld [vmem:[#allocation8 + $0x4] sm:$0xf]
    %v925 = vld [vmem:[#allocation8 + $0x8] sm:$0xf]
    %v926 = vld [vmem:[#allocation8 + $0xc] sm:$0xf]
    %v927 = vld [vmem:[#allocation8 + $0x10] sm:$0xf]
    %v928 = vld [vmem:[#allocation8 + $0x14] sm:$0xf]
    %v929 = vld [vmem:[#allocation8 + $0x18] sm:$0xf]
    %v930 = vld [vmem:[#allocation8 + $0x1c] sm:$0xf]
    %v931 = vld [vmem:[#allocation8 + $0x20] sm:$0xf]
    %v932 = vld [vmem:[#allocation8 + $0x24] sm:$0xf]
    %v933 = vld [vmem:[#allocation8 + $0x28] sm:$0xf]
    %v934 = vld [vmem:[#allocation8 + $0x2c] sm:$0xf]
    %v935 = vld [vmem:[#allocation8 + $0x30] sm:$0xf]
    %v936 = vld [vmem:[#allocation8 + $0x34] sm:$0xf]
    %v937 = vld [vmem:[#allocation8 + $0x38] sm:$0xf]
    %v938 = vld [vmem:[#allocation8 + $0x3c] sm:$0xf]
    %v939 = vld [vmem:[#allocation8 + $0x40] sm:$0xf]
    %v940 = vld [vmem:[#allocation8 + $0x44] sm:$0xf]
    %v941 = vld [vmem:[#allocation8 + $0x48] sm:$0xf]
    %v942 = vld [vmem:[#allocation8 + $0x4c] sm:$0xf]
    %v943 = vld [vmem:[#allocation8 + $0x50] sm:$0xf]
    %v944 = vld [vmem:[#allocation8 + $0x54] sm:$0xf]
    %v945 = vld [vmem:[#allocation8 + $0x58] sm:$0xf]
    %v946 = vld [vmem:[#allocation8 + $0x5c] sm:$0xf]
    %v947 = vld [vmem:[#allocation8 + $0x60] sm:$0xf]
    %v948 = vld [vmem:[#allocation8 + $0x64] sm:$0xf]
    %v949 = vld [vmem:[#allocation8 + $0x68] sm:$0xf]
    %v950 = vld [vmem:[#allocation8 + $0x6c] sm:$0xf]
    %v951 = vld [vmem:[#allocation8 + $0x70] sm:$0xf]
    %v952 = vld [vmem:[#allocation8 + $0x74] sm:$0xf]
    %v953 = vld [vmem:[#allocation8 + $0x78] sm:$0xf]
    %v954 = vld [vmem:[#allocation8 + $0x7c] sm:$0xf]
    %v955 = vld [vmem:[%s4] sm:$0x1]
    %v957 = vperm.slane %v955, 0
    %v991 = vunpack.c.l.b16 %v923
    %v992 = vunpack.c.l.b16 %v924
    %v993 = vunpack.c.l.b16 %v925
    %v994 = vunpack.c.l.b16 %v926
    %v995 = vunpack.c.l.b16 %v927
    %v996 = vunpack.c.l.b16 %v928
    %v997 = vunpack.c.l.b16 %v929
    %v998 = vunpack.c.l.b16 %v930
    %v999 = vunpack.c.l.b16 %v931
    %v1000 = vunpack.c.l.b16 %v932
    %v1001 = vunpack.c.l.b16 %v933
    %v1002 = vunpack.c.l.b16 %v934
    %v1003 = vunpack.c.l.b16 %v935
    %v1004 = vunpack.c.l.b16 %v936
    %v1005 = vunpack.c.l.b16 %v937
    %v1006 = vunpack.c.l.b16 %v938
    %v1007 = vunpack.c.l.b16 %v939
    %v1008 = vunpack.c.l.b16 %v940
    %v1009 = vunpack.c.l.b16 %v941
    %v1010 = vunpack.c.l.b16 %v942
    %v1011 = vunpack.c.l.b16 %v943
    %v1012 = vunpack.c.l.b16 %v944
    %v1013 = vunpack.c.l.b16 %v945
    %v1014 = vunpack.c.l.b16 %v946
    %v1015 = vunpack.c.l.b16 %v947
    %v1016 = vunpack.c.l.b16 %v948
    %v1017 = vunpack.c.l.b16 %v949
    %v1018 = vunpack.c.l.b16 %v950
    %v1019 = vunpack.c.l.b16 %v951
    %v1020 = vunpack.c.l.b16 %v952
    %v1021 = vunpack.c.l.b16 %v953
    %v1022 = vunpack.c.l.b16 %v954
    %v1023 = vpack.c.b16 %v992, %v991
    %v1024 = vpack.c.b16 %v994, %v993
    %v1025 = vpack.c.b16 %v996, %v995
    %v1026 = vpack.c.b16 %v998, %v997
    %v1027 = vpack.c.b16 %v1000, %v999
    %v1028 = vpack.c.b16 %v1002, %v1001
    %v1029 = vpack.c.b16 %v1004, %v1003
    %v1030 = vpack.c.b16 %v1006, %v1005
    %v1031 = vpack.c.b16 %v1008, %v1007
    %v1032 = vpack.c.b16 %v1010, %v1009
    %v1033 = vpack.c.b16 %v1012, %v1011
    %v1034 = vpack.c.b16 %v1014, %v1013
    %v1035 = vpack.c.b16 %v1016, %v1015
    %v1036 = vpack.c.b16 %v1018, %v1017
    %v1037 = vpack.c.b16 %v1020, %v1019
    %v1038 = vpack.c.b16 %v1022, %v1021
    %1055 = vmatpush.bf16.msra.mxu0 %v1030
    %1056 = vmatpush.bf16.msra.mxu0 %v1029
    %1057 = vmatpush.bf16.msra.mxu0 %v1028
    %1058 = vmatpush.bf16.msra.mxu0 %v1027
    %1059 = vmatpush.bf16.msra.mxu0 %v1026
    %1060 = vmatpush.bf16.msra.mxu0 %v1025
    %1061 = vmatpush.bf16.msra.mxu0 %v1024
    %1062 = vmatpush.bf16.msra.mxu0 %v1023
    %1063 = vmatmul.bf16.gmra.mxu0 %v921
    %v1064 = vpop.f32.mrf.mxu0
    %v1065 = vadd.f32 %v957, %v1064
    %v1066 = vpop.f32.mrf.mxu0
    %v1067 = vadd.f32 %v957, %v1066
    %1068 = vdwg.mxu0
    %1069 = vmatpush.bf16.msra.mxu0 %v1038
    %1070 = vmatpush.bf16.msra.mxu0 %v1037
    %1071 = vmatpush.bf16.msra.mxu0 %v1036
    %1072 = vmatpush.bf16.msra.mxu0 %v1035
    %1073 = vmatpush.bf16.msra.mxu0 %v1034
    %1074 = vmatpush.bf16.msra.mxu0 %v1033
    %1075 = vmatpush.bf16.msra.mxu0 %v1032
    %1076 = vmatpush.bf16.msra.mxu0 %v1031
    %1077 = vmatmul.bf16.gmra.mxu0 %v922
    %v1078 = vpop.f32.mrf.mxu0
    %v1079 = vadd.f32 %v1065, %v1078
    %v1080 = vpop.f32.mrf.mxu0
    %v1081 = vadd.f32 %v1067, %v1080
    %1082 = vdwg.mxu0
    %v1083 = vmax.f32 %v1079, 0.0
    %v1084 = vmax.f32 %v1081, 0.0
    %v1085 = vld [vmem:[%s5] sm:$0x1]
    %s1086 = sld [smem:[#allocation2]]
    %v1087 = vstv %s1086
    %1088 = vmatpush.xpose.msra.mxu0 0.0
    %1089 = vmatpush.xpose.msra.mxu0 0.0
    %1090 = vmatpush.xpose.msra.mxu0 0.0
    %1091 = vmatpush.xpose.msra.mxu0 0.0
    %1092 = vmatpush.xpose.msra.mxu0 0.0
    %1093 = vmatpush.xpose.msra.mxu0 0.0
    %1094 = vmatpush.xpose.msra.mxu0 0.0
    %1095 = vmatpush.xpose.msra.mxu0 0.0
    %1096 = vmatpush.xpose.msra.mxu0 0.0
    %1097 = vmatpush.xpose.msra.mxu0 0.0
    %1098 = vmatpush.xpose.msra.mxu0 0.0
    %1099 = vmatpush.xpose.msra.mxu0 0.0
    %1100 = vmatpush.xpose.msra.mxu0 0.0
    %1101 = vmatpush.xpose.msra.mxu0 0.0
    %1102 = vmatpush.xpose.msra.mxu0 %v1084
    %1103 = vmatpush.xpose.msra.mxu0 %v1083
    %1104 = vmatmul.f32.gmra.mxu0 %v1085
    %v1105 = vpop.f32.mrf.mxu0
    %v1106 = vadd.f32 %v1087, %v1105
    %1107 = vdwg.mxu0
    %v1108 = vxor.u32 %v1106, 2147483648
    %v1109 = vmul.f32 %v1108, 1.442695
    %v1110 = vpow.pop %v1109
    %v1111 = vadd.f32 %v1110, 1.0
    %v1112 = vrcp.pop %v1111
    %v1113 = vmul.f32 %v1111, %v1112
    %v1114 = vsub.f32 1.0, %v1113
    %v1115 = vmul.f32 %v1112, %v1114
    %v1116 = vadd.f32 %v1112, %v1115
    %vm1117 = vweird.f32 %v1111
    %vm1118 = vweird.f32 %v1112
    %vm1119 = vmor %vm1117, %vm1118
    %v1120 = vsel %vm1119, %v1112, %v1116
    %v1121 = vand.u32 2147483647, %v1111
    %vm1122 = vcmp.eq.f32.partialorder %v1121, 8.507059e+37
    %v1123 = vand.u32 %v1111, 2147483648
    %v1124 = vor.u32 1.1754944e-38, %v1123
    %v1125 = vsel %vm1122, %v1124, %v1120
    %v1126 = vmul.f32 1.0, %v1125
    %vm1127 = vcmask 122880
    %1128 = vst.msk [vmem:[#allocation9] sm:$0x1] %vm1127, %v1126
    // Predicated region
    $region42: #{tpu_custom_call.1} parent=1 // pred_check
      _
    $region43: #{tpu_custom_call.1} parent=1 // pred_check_branch
      %1130 = sbr.rel (0) target = $region45
    $region44: #{tpu_custom_call.1} parent=1 // pred_region
      %1132 = vsyncadd [#allocation5], 0
      %s1134 = sshll.u32 [#allocation9], 4
      %s1135 = int_to_ptr.vmem [resolvable:$true] %s1134
      %s1136 = sshll.u32 %s7, 4
      %s1137 = int_to_ptr.hbm [resolvable:$true] %s1136
      %1139 = dma.vmem_to_hbm [thread:$0]  %s1135, 16, %s1137, [#allocation5]
    $region45: #{tpu_custom_call.1} parent=1 // pred_fallthru
      _
    // Predicated region
    $region46: #{tpu_custom_call.1} parent=1 // pred_check
      _
    $region47: #{tpu_custom_call.1} parent=1 // pred_check_branch
      %1141 = sbr.rel (0) target = $region49
    $region48: #{tpu_custom_call.1} parent=1 // pred_region
      %1143 = dma.done [#allocation5], 16
    $region49: #{tpu_custom_call.1} parent=1 // pred_fallthru
      _
    %1144 = vsyncpa [#allocation4], 1
    %1145 = vsyncpa [#allocation7], 1
    %1146 = vsyncpa [#allocation5], 1

</llo_original>
